<compile_context>
chip_gen: v6e
topology: v6e:2x2x1
jax: 0.10.0
libtpu: 0.0.40
codegen_flags: <defaults>
</compile_context>

<pallas_src>
import functools

import jax
import jax.numpy as jnp
from jax.experimental import pallas as pl
from jax.experimental.pallas import tpu as pltpu

SUBLANE = 8
LANE = 128


def _round_up(n, m):
    return (n + m - 1) // m * m


def _rnn_kernel(x_ref, wih_ref, whh_ref, b_ref, wout_ref, bout_ref,
                y_ref, h_ref, *, seq_len, batch_pad):
    """Shapes (all padded):
       x_ref: (T*Bp, I), wih_ref: (I, Hp), whh_ref: (Hp, Hp), b_ref: (1, Hp),
       wout_ref: (Hp, Op), bout_ref: (1, Op), y_ref: (T*Bp, Op), h_ref: (T*Bp, Hp)."""
    # 1) Batched input projection with folded biases, once for all timesteps.
    #    Kept as a value (a handful of vregs) -- never read back from VMEM.
    xw = (jnp.dot(x_ref[...], wih_ref[...], preferred_element_type=jnp.float32)
          + b_ref[...])                                   # (T*Bp, Hp)

    whh = whh_ref[...]                                    # (Hp, Hp), loaded once
    hidden_pad = whh.shape[0]
    h_prev = jnp.zeros((batch_pad, hidden_pad), jnp.float32)   # hidden=None -> zeros

    # 2) Sequential recurrence, fully unrolled at trace time (static offsets, full
    #    (8,128) tiles).  Body: matmul -> add -> relu; no VMEM reads on the chain.
    hs = []
    for t in range(seq_len):
        row = t * batch_pad
        pre = xw[row:row + batch_pad, :] + jnp.dot(
            h_prev, whh, preferred_element_type=jnp.float32)
        h_prev = jnp.maximum(pre, 0.0)                    # relu nonlinearity
        hs.append(h_prev)

    h_all = jnp.concatenate(hs, axis=0)                   # (T*Bp, Hp)

    # 3) Lane-dense bulk stores + batched output head (single matmul).
    h_ref[...] = h_all
    y_ref[...] = (jnp.dot(h_all, wout_ref[...], preferred_element_type=jnp.float32)
                  + bout_ref[...])


def prepare_params(params):
    """One-time weight prep: transpose to (K, N) layout, fold b_ih+b_hh, and
    zero-pad H and O up to a full 128-lane tile."""
    H, I = params["w_ih"].shape
    O = params["w_out"].shape[0]
    Hp = _round_up(H, LANE)
    Op = _round_up(O, LANE)
    wih_t = jnp.zeros((I, Hp), jnp.float32).at[:, :H].set(params["w_ih"].T)
    whh_t = jnp.zeros((Hp, Hp), jnp.float32).at[:H, :H].set(params["w_hh"].T)
    b_comb = jnp.zeros((1, Hp), jnp.float32).at[0, :H].set(
        params["b_ih"] + params["b_hh"])
    wout_t = jnp.zeros((Hp, Op), jnp.float32).at[:H, :O].set(params["w_out"].T)
    b_out = jnp.zeros((1, Op), jnp.float32).at[0, :O].set(params["b_out"])
    return {"w_ih_t": wih_t, "w_hh_t": whh_t, "b": b_comb,
            "w_out_t": wout_t, "b_out": b_out}


@functools.partial(jax.jit, static_argnames=("hidden_size", "output_size"))
def net_forward(x, prep, *, hidden_size, output_size):
    """x: (T, B, I) float32.  Returns (y, out) = (linear(out), rnn hidden states)."""
    T, B, I = x.shape
    Bp = _round_up(B, SUBLANE)
    Hp = prep["w_hh_t"].shape[0]
    Op = prep["w_out_t"].shape[1]

    # Zero-pad batch to a full sublane tile and flatten to a lane-dense slab.
    x_pad = jnp.zeros((T, Bp, I), jnp.float32).at[:, :B, :].set(x)
    x2 = x_pad.reshape(T * Bp, I)

    kernel = functools.partial(_rnn_kernel, seq_len=T, batch_pad=Bp)
    vmem = pl.BlockSpec(memory_space=pltpu.MemorySpace.VMEM)

    y2, h2 = pl.pallas_call(
        kernel,
        out_shape=(jax.ShapeDtypeStruct((T * Bp, Op), jnp.float32),
                   jax.ShapeDtypeStruct((T * Bp, Hp), jnp.float32)),
        in_specs=[vmem] * 6,
        out_specs=(vmem, vmem),
        compiler_params=pltpu.CompilerParams(
            vmem_limit_bytes=32 * 1024 * 1024),
    )(x2, prep["w_ih_t"], prep["w_hh_t"], prep["b"], prep["w_out_t"], prep["b_out"])

    # Slice the zero padding back off (exact: padded lanes/rows are identically 0).
    y = y2.reshape(T, Bp, Op)[:, :B, :output_size]
    out = h2.reshape(T, Bp, Hp)[:, :B, :hidden_size]
    return y, out


def init_params(key, input_size, hidden_size, output_size):
    # Deterministic init mirroring PyTorch's uniform(-1/sqrt(fan), 1/sqrt(fan)).
    k = jax.random.split(key, 6)
    s = 1.0 / jnp.sqrt(hidden_size)
    return {
        "w_ih": jax.random.uniform(k[0], (hidden_size, input_size), jnp.float32, -s, s),
        "w_hh": jax.random.uniform(k[1], (hidden_size, hidden_size), jnp.float32, -s, s),
        "b_ih": jax.random.uniform(k[2], (hidden_size,), jnp.float32, -s, s),
        "b_hh": jax.random.uniform(k[3], (hidden_size,), jnp.float32, -s, s),
        "w_out": jax.random.uniform(k[4], (output_size, hidden_size), jnp.float32, -s, s),
        "b_out": jax.random.uniform(k[5], (output_size,), jnp.float32, -s, s),
    }


def _reference(x, params):
    # Pure-JAX reference of the same forward (correctness sanity check).
    def step(h, x_t):
        h_new = jax.nn.relu(x_t @ params["w_ih"].T + params["b_ih"]
                            + h @ params["w_hh"].T + params["b_hh"])
        return h_new, h_new
    h0 = jnp.zeros((x.shape[1], params["w_hh"].shape[0]), jnp.float32)
    _, out = jax.lax.scan(step, h0, x)
    y = out @ params["w_out"].T + params["b_out"]
    return y, out


if __name__ == "__main__":
    # Small shapes consistent with the module: seq=8, batch=2, input=4, hidden=32, output=3
    T, B, I, H, O = 8, 2, 4, 32, 3
    key = jax.random.PRNGKey(0)
    kx, kp = jax.random.split(key)
    x = jax.random.normal(kx, (T, B, I), jnp.float32)
    params = init_params(kp, I, H, O)

    prep = prepare_params(params)          # one-time transpose / bias-fold / padding
    y, out = net_forward(x, prep, hidden_size=H, output_size=O)
    y, out = jax.block_until_ready((y, out))

    y_ref, out_ref = _reference(x, params)
    assert jnp.allclose(y, y_ref, atol=1e-5, rtol=1e-5), "linear head mismatch"
    assert jnp.allclose(out, out_ref, atol=1e-5, rtol=1e-5), "hidden states mismatch"

    print("KERNEL_OK")
</pallas_src>

<mosaic_0001>
module attributes {stable_mosaic.version = 11 : i64} {
  func.func @_rnn_kernel(%arg0: memref<64x4xf32, #tpu.memory_space<vmem>>, %arg1: memref<4x128xf32, #tpu.memory_space<vmem>>, %arg2: memref<128x128xf32, #tpu.memory_space<vmem>>, %arg3: memref<1x128xf32, #tpu.memory_space<vmem>>, %arg4: memref<128x128xf32, #tpu.memory_space<vmem>>, %arg5: memref<1x128xf32, #tpu.memory_space<vmem>>, %arg6: memref<64x128xf32, #tpu.memory_space<vmem>>, %arg7: memref<64x128xf32, #tpu.memory_space<vmem>>) attributes {dimension_semantics = [], scalar_prefetch = 0 : i64, scratch_operands = 0 : i64, tpu.core_type = #tpu.core_type<tc>} {
    %c0 = arith.constant 0 : index
    %c0_0 = arith.constant 0 : index
    %0 = vector.load %arg0[%c0, %c0_0] : memref<64x4xf32, #tpu.memory_space<vmem>>, vector<64x4xf32>
    %c0_1 = arith.constant 0 : index
    %c0_2 = arith.constant 0 : index
    %1 = vector.load %arg1[%c0_1, %c0_2] : memref<4x128xf32, #tpu.memory_space<vmem>>, vector<4x128xf32>
    %cst = arith.constant dense<0.000000e+00> : vector<64x128xf32>
    %2 = tpu.matmul %0, %1, %cst {dimension_numbers = #tpu.dot_dimension_numbers<[1], [0], [0], [1], [0, 0, 1, 1], [], []>} : vector<64x4xf32>, vector<4x128xf32>, vector<64x128xf32> -> vector<64x128xf32>
    %c0_3 = arith.constant 0 : index
    %c0_4 = arith.constant 0 : index
    %3 = vector.load %arg3[%c0_3, %c0_4] : memref<1x128xf32, #tpu.memory_space<vmem>>, vector<1x128xf32>
    %4 = vector.broadcast %3 : vector<1x128xf32> to vector<64x128xf32>
    %5 = arith.addf %2, %4 : vector<64x128xf32>
    %c0_5 = arith.constant 0 : index
    %c0_6 = arith.constant 0 : index
    %6 = vector.load %arg2[%c0_5, %c0_6] : memref<128x128xf32, #tpu.memory_space<vmem>>, vector<128x128xf32>
    %cst_7 = arith.constant 0.000000e+00 : f32
    %7 = vector.broadcast %cst_7 : f32 to vector<8x128xf32>
    %8 = vector.extract_strided_slice %5 {offsets = [0, 0], sizes = [8, 128], strides = [1, 1]} : vector<64x128xf32> to vector<8x128xf32>
    %cst_8 = arith.constant dense<0.000000e+00> : vector<8x128xf32>
    %9 = tpu.matmul %7, %6, %cst_8 {dimension_numbers = #tpu.dot_dimension_numbers<[1], [0], [0], [1], [0, 0, 1, 1], [], []>} : vector<8x128xf32>, vector<128x128xf32>, vector<8x128xf32> -> vector<8x128xf32>
    %10 = arith.addf %8, %9 : vector<8x128xf32>
    %cst_9 = arith.constant 0.000000e+00 : f32
    %11 = vector.broadcast %cst_9 : f32 to vector<8x128xf32>
    %12 = arith.maximumf %10, %11 : vector<8x128xf32>
    %13 = vector.extract_strided_slice %5 {offsets = [8, 0], sizes = [8, 128], strides = [1, 1]} : vector<64x128xf32> to vector<8x128xf32>
    %cst_10 = arith.constant dense<0.000000e+00> : vector<8x128xf32>
    %14 = tpu.matmul %12, %6, %cst_10 {dimension_numbers = #tpu.dot_dimension_numbers<[1], [0], [0], [1], [0, 0, 1, 1], [], []>} : vector<8x128xf32>, vector<128x128xf32>, vector<8x128xf32> -> vector<8x128xf32>
    %15 = arith.addf %13, %14 : vector<8x128xf32>
    %cst_11 = arith.constant 0.000000e+00 : f32
    %16 = vector.broadcast %cst_11 : f32 to vector<8x128xf32>
    %17 = arith.maximumf %15, %16 : vector<8x128xf32>
    %18 = vector.extract_strided_slice %5 {offsets = [16, 0], sizes = [8, 128], strides = [1, 1]} : vector<64x128xf32> to vector<8x128xf32>
    %cst_12 = arith.constant dense<0.000000e+00> : vector<8x128xf32>
    %19 = tpu.matmul %17, %6, %cst_12 {dimension_numbers = #tpu.dot_dimension_numbers<[1], [0], [0], [1], [0, 0, 1, 1], [], []>} : vector<8x128xf32>, vector<128x128xf32>, vector<8x128xf32> -> vector<8x128xf32>
    %20 = arith.addf %18, %19 : vector<8x128xf32>
    %cst_13 = arith.constant 0.000000e+00 : f32
    %21 = vector.broadcast %cst_13 : f32 to vector<8x128xf32>
    %22 = arith.maximumf %20, %21 : vector<8x128xf32>
    %23 = vector.extract_strided_slice %5 {offsets = [24, 0], sizes = [8, 128], strides = [1, 1]} : vector<64x128xf32> to vector<8x128xf32>
    %cst_14 = arith.constant dense<0.000000e+00> : vector<8x128xf32>
    %24 = tpu.matmul %22, %6, %cst_14 {dimension_numbers = #tpu.dot_dimension_numbers<[1], [0], [0], [1], [0, 0, 1, 1], [], []>} : vector<8x128xf32>, vector<128x128xf32>, vector<8x128xf32> -> vector<8x128xf32>
    %25 = arith.addf %23, %24 : vector<8x128xf32>
    %cst_15 = arith.constant 0.000000e+00 : f32
    %26 = vector.broadcast %cst_15 : f32 to vector<8x128xf32>
    %27 = arith.maximumf %25, %26 : vector<8x128xf32>
    %28 = vector.extract_strided_slice %5 {offsets = [32, 0], sizes = [8, 128], strides = [1, 1]} : vector<64x128xf32> to vector<8x128xf32>
    %cst_16 = arith.constant dense<0.000000e+00> : vector<8x128xf32>
    %29 = tpu.matmul %27, %6, %cst_16 {dimension_numbers = #tpu.dot_dimension_numbers<[1], [0], [0], [1], [0, 0, 1, 1], [], []>} : vector<8x128xf32>, vector<128x128xf32>, vector<8x128xf32> -> vector<8x128xf32>
    %30 = arith.addf %28, %29 : vector<8x128xf32>
    %cst_17 = arith.constant 0.000000e+00 : f32
    %31 = vector.broadcast %cst_17 : f32 to vector<8x128xf32>
    %32 = arith.maximumf %30, %31 : vector<8x128xf32>
    %33 = vector.extract_strided_slice %5 {offsets = [40, 0], sizes = [8, 128], strides = [1, 1]} : vector<64x128xf32> to vector<8x128xf32>
    %cst_18 = arith.constant dense<0.000000e+00> : vector<8x128xf32>
    %34 = tpu.matmul %32, %6, %cst_18 {dimension_numbers = #tpu.dot_dimension_numbers<[1], [0], [0], [1], [0, 0, 1, 1], [], []>} : vector<8x128xf32>, vector<128x128xf32>, vector<8x128xf32> -> vector<8x128xf32>
    %35 = arith.addf %33, %34 : vector<8x128xf32>
    %cst_19 = arith.constant 0.000000e+00 : f32
    %36 = vector.broadcast %cst_19 : f32 to vector<8x128xf32>
    %37 = arith.maximumf %35, %36 : vector<8x128xf32>
    %38 = vector.extract_strided_slice %5 {offsets = [48, 0], sizes = [8, 128], strides = [1, 1]} : vector<64x128xf32> to vector<8x128xf32>
    %cst_20 = arith.constant dense<0.000000e+00> : vector<8x128xf32>
    %39 = tpu.matmul %37, %6, %cst_20 {dimension_numbers = #tpu.dot_dimension_numbers<[1], [0], [0], [1], [0, 0, 1, 1], [], []>} : vector<8x128xf32>, vector<128x128xf32>, vector<8x128xf32> -> vector<8x128xf32>
    %40 = arith.addf %38, %39 : vector<8x128xf32>
    %cst_21 = arith.constant 0.000000e+00 : f32
    %41 = vector.broadcast %cst_21 : f32 to vector<8x128xf32>
    %42 = arith.maximumf %40, %41 : vector<8x128xf32>
    %43 = vector.extract_strided_slice %5 {offsets = [56, 0], sizes = [8, 128], strides = [1, 1]} : vector<64x128xf32> to vector<8x128xf32>
    %cst_22 = arith.constant dense<0.000000e+00> : vector<8x128xf32>
    %44 = tpu.matmul %42, %6, %cst_22 {dimension_numbers = #tpu.dot_dimension_numbers<[1], [0], [0], [1], [0, 0, 1, 1], [], []>} : vector<8x128xf32>, vector<128x128xf32>, vector<8x128xf32> -> vector<8x128xf32>
    %45 = arith.addf %43, %44 : vector<8x128xf32>
    %cst_23 = arith.constant 0.000000e+00 : f32
    %46 = vector.broadcast %cst_23 : f32 to vector<8x128xf32>
    %47 = arith.maximumf %45, %46 : vector<8x128xf32>
    %48 = tpu.concatenate %12, %17, %22, %27, %32, %37, %42, %47 in 0 : vector<8x128xf32>, vector<8x128xf32>, vector<8x128xf32>, vector<8x128xf32>, vector<8x128xf32>, vector<8x128xf32>, vector<8x128xf32>, vector<8x128xf32> -> vector<64x128xf32>
    %c0_24 = arith.constant 0 : index
    %c0_25 = arith.constant 0 : index
    %49 = vector.load %arg7[%c0_24, %c0_25] : memref<64x128xf32, #tpu.memory_space<vmem>>, vector<64x128xf32>
    tpu.vector_store %arg7[%c0_24, %c0_25], %48 {strides = array<i32>} : memref<64x128xf32, #tpu.memory_space<vmem>>, vector<64x128xf32>,
    %c0_26 = arith.constant 0 : index
    %c0_27 = arith.constant 0 : index
    %50 = vector.load %arg4[%c0_26, %c0_27] : memref<128x128xf32, #tpu.memory_space<vmem>>, vector<128x128xf32>
    %cst_28 = arith.constant dense<0.000000e+00> : vector<64x128xf32>
    %51 = tpu.matmul %48, %50, %cst_28 {dimension_numbers = #tpu.dot_dimension_numbers<[1], [0], [0], [1], [0, 0, 1, 1], [], []>} : vector<64x128xf32>, vector<128x128xf32>, vector<64x128xf32> -> vector<64x128xf32>
    %c0_29 = arith.constant 0 : index
    %c0_30 = arith.constant 0 : index
    %52 = vector.load %arg5[%c0_29, %c0_30] : memref<1x128xf32, #tpu.memory_space<vmem>>, vector<1x128xf32>
    %53 = vector.broadcast %52 : vector<1x128xf32> to vector<64x128xf32>
    %54 = arith.addf %51, %53 : vector<64x128xf32>
    %c0_31 = arith.constant 0 : index
    %c0_32 = arith.constant 0 : index
    %55 = vector.load %arg6[%c0_31, %c0_32] : memref<64x128xf32, #tpu.memory_space<vmem>>, vector<64x128xf32>
    tpu.vector_store %arg6[%c0_31, %c0_32], %54 {strides = array<i32>} : memref<64x128xf32, #tpu.memory_space<vmem>>, vector<64x128xf32>,
    return
  }
}

</mosaic_0001>

<llo_original>
// kernel: net_forward.1
$region0: #{net_forward.1}
  #allocation0 [shape = 'u32[]', space=smem, size = 0x4, offset = 0x4, fixed_abs, tag = 'smem constant byte address 0x4 - core index']
  #allocation1 [shape = 'u32[144,128]{1,0:T(1,128)}', space=vmem, size = 0x12000, scoped, tag = 'internal scratch']
  %s0 = inlined_call_operand.vmem [shape: f32[64,4], index: 0, kind: input, shape index: {}]
  %s1 = inlined_call_operand.vmem [shape: f32[4,128], index: 1, kind: input, shape index: {}]
  %s2 = inlined_call_operand.hbm [shape: f32[128,128], index: 2, kind: input, shape index: {}]
  %s3 = inlined_call_operand.vmem [shape: f32[1,128], index: 3, kind: input, shape index: {}]
  %s4 = inlined_call_operand.hbm [shape: f32[128,128], index: 4, kind: input, shape index: {}]
  %s5 = inlined_call_operand.vmem [shape: f32[1,128], index: 5, kind: input, shape index: {}]
  %s6 = inlined_call_operand.vmem [shape: f32[64,128], index: 6, kind: output, shape index: {0}]
  %s7 = inlined_call_operand.vmem [shape: f32[64,128], index: 7, kind: output, shape index: {1}]
  %8 = xla_tuple %s6, %s7
  %s9 = sld [smem:[#allocation0]]
  $region50: #{net_forward.1} parent=0
    _
  %s11 = ssub.s32 1, %s9
  %s12 = scalar_select 0, %s11, %s9
  $region1: #{net_forward.1} parent=0
    #allocation2 [shape = 'u8[65536]{0}', space=vmem, size = 0x10000, scoped, tag = 'input window, operand 2, single buffered']
    #allocation3 [shape = 's32[1]{0}', space=sflag, size = 0x4, scoped, tag = 'scoped memory for net_forward.1']
    #allocation4 [shape = 'u8[65536]{0}', space=vmem, size = 0x10000, scoped, tag = 'input window, operand 4, single buffered']
    #allocation5 [shape = 's32[1]{0}', space=sflag, size = 0x4, scoped, tag = 'scoped memory for net_forward.1']
    %13 = vsyncpa [#allocation3], 0
    %14 = vsyncpa [#allocation5], 0
    // Predicated region
    $region2: #{net_forward.1} parent=1 // pred_check
      _
    $region3: #{net_forward.1} parent=1 // pred_check_branch
      %16 = sbr.rel (0) target = $region5
    $region4: #{net_forward.1} parent=1 // pred_region
      _
    $region5: #{net_forward.1} parent=1 // pred_fallthru
      _
    // Predicated region
    $region6: #{net_forward.1} parent=1 // pred_check
      _
    $region7: #{net_forward.1} parent=1 // pred_check_branch
      %18 = sbr.rel (0) target = $region9
    $region8: #{net_forward.1} parent=1 // pred_region
      _
    $region9: #{net_forward.1} parent=1 // pred_fallthru
      _
    // Predicated region
    $region10: #{net_forward.1} parent=1 // pred_check
      _
    $region11: #{net_forward.1} parent=1 // pred_check_branch
      %20 = sbr.rel (0) target = $region13
    $region12: #{net_forward.1} parent=1 // pred_region
      %s22 = ssub.s32 2048, 2048
      %23 = vsyncadd [#allocation3], %s22
      %s24 = sshll.u32 [#allocation2], 4
      %s25 = int_to_ptr.vmem [resolvable:$true] %s24
      %30 = dma.hbm_to_vmem [thread:$0]  %s2, 2048, %s25, [#allocation3], 128, 128, 8
    $region13: #{net_forward.1} parent=1 // pred_fallthru
      _
    // Predicated region
    $region14: #{net_forward.1} parent=1 // pred_check
      _
    $region15: #{net_forward.1} parent=1 // pred_check_branch
      %32 = sbr.rel (0) target = $region17
    $region16: #{net_forward.1} parent=1 // pred_region
      _
    $region17: #{net_forward.1} parent=1 // pred_fallthru
      _
    // Predicated region
    $region18: #{net_forward.1} parent=1 // pred_check
      _
    $region19: #{net_forward.1} parent=1 // pred_check_branch
      %34 = sbr.rel (0) target = $region21
    $region20: #{net_forward.1} parent=1 // pred_region
      %s36 = ssub.s32 2048, 2048
      %37 = vsyncadd [#allocation5], %s36
      %s38 = sshll.u32 [#allocation4], 4
      %s39 = int_to_ptr.vmem [resolvable:$true] %s38
      %44 = dma.hbm_to_vmem [thread:$0]  %s4, 2048, %s39, [#allocation5], 128, 128, 8
    $region21: #{net_forward.1} parent=1 // pred_fallthru
      _
    // Predicated region
    $region22: #{net_forward.1} parent=1 // pred_check
      _
    $region23: #{net_forward.1} parent=1 // pred_check_branch
      %46 = sbr.rel (0) target = $region25
    $region24: #{net_forward.1} parent=1 // pred_region
      _
    $region25: #{net_forward.1} parent=1 // pred_fallthru
      _
    // Predicated region
    $region26: #{net_forward.1} parent=1 // pred_check
      _
    $region27: #{net_forward.1} parent=1 // pred_check_branch
      %48 = sbr.rel (0) target = $region29
    $region28: #{net_forward.1} parent=1 // pred_region
      %49 = dma.done [#allocation3], 2048
    $region29: #{net_forward.1} parent=1 // pred_fallthru
      _
    // Predicated region
    $region30: #{net_forward.1} parent=1 // pred_check
      _
    $region31: #{net_forward.1} parent=1 // pred_check_branch
      %51 = sbr.rel (0) target = $region33
    $region32: #{net_forward.1} parent=1 // pred_region
      %52 = dma.done [#allocation5], 2048
    $region33: #{net_forward.1} parent=1 // pred_fallthru
      _
    %v53 = vld [vmem:[%s0] sm:$0xff]
    %v54 = vld [vmem:[%s0 + $0x8] sm:$0xff]
    %v55 = vld [vmem:[%s0 + $0x10] sm:$0xff]
    %v56 = vld [vmem:[%s0 + $0x18] sm:$0xff]
    %v57 = vld [vmem:[%s0 + $0x20] sm:$0xff]
    %v58 = vld [vmem:[%s0 + $0x28] sm:$0xff]
    %v59 = vld [vmem:[%s0 + $0x30] sm:$0xff]
    %v60 = vld [vmem:[%s0 + $0x38] sm:$0xff]
    %v61 = vld [vmem:[%s1] sm:$0xf]
    %v62 = vld [vmem:[%s3] sm:$0x1]
    %v64 = vlaneseq
    %v65 = vshrl.u32 %v64, 7
    %v66 = vsub.s32 0, %v65
    %v67 = vrot.slane %v62, %v66
    %vm69 = vcmask 31744
    %v71 = vsel %vm69, %v53, 0
    %v74 = vsel %vm69, %v54, 0
    %v77 = vsel %vm69, %v55, 0
    %v80 = vsel %vm69, %v56, 0
    %v83 = vsel %vm69, %v57, 0
    %v86 = vsel %vm69, %v58, 0
    %v89 = vsel %vm69, %v59, 0
    %v92 = vsel %vm69, %v60, 0
    %vm94 = vcmask 1043456
    %v96 = vsel %vm94, %v61, 0
    %98 = vmatprep.subr.mxu0 0.0
    %99 = vmatpush1.msra.mxu0 0.0
    %100 = vmatprep.subr.mxu0 0.0
    %101 = vmatpush1.msra.mxu0 0.0
    %102 = vmatprep.subr.mxu0 0.0
    %103 = vmatpush1.msra.mxu0 0.0
    %104 = vmatprep.subr.mxu0 0.0
    %105 = vmatpush1.msra.mxu0 0.0
    %106 = vmatprep.subr.mxu0 0.0
    %107 = vmatpush1.msra.mxu0 0.0
    %108 = vmatprep.subr.mxu0 0.0
    %109 = vmatpush1.msra.mxu0 0.0
    %110 = vmatprep.subr.mxu0 0.0
    %111 = vmatpush1.msra.mxu0 0.0
    %112 = vmatprep.subr.mxu0 0.0
    %113 = vmatpush1.msra.mxu0 0.0
    %114 = vmatprep.subr.mxu0 0.0
    %115 = vmatpush1.msra.mxu0 0.0
    %116 = vmatprep.subr.mxu0 0.0
    %117 = vmatpush1.msra.mxu0 0.0
    %118 = vmatprep.subr.mxu0 0.0
    %119 = vmatpush1.msra.mxu0 0.0
    %120 = vmatprep.subr.mxu0 0.0
    %121 = vmatpush1.msra.mxu0 0.0
    %122 = vmatprep.subr.mxu0 0.0
    %123 = vmatpush1.msra.mxu0 0.0
    %124 = vmatprep.subr.mxu0 0.0
    %125 = vmatpush1.msra.mxu0 0.0
    %126 = vmatprep.subr.mxu0 0.0
    %127 = vmatpush1.msra.mxu0 0.0
    %128 = vmatprep.subr.mxu0 0.0
    %129 = vmatpush1.msra.mxu0 %v96
    %130 = vmatprep.subr.mxu0 0.0
    %131 = vmatpush2.msra.mxu0 0.0
    %132 = vmatprep.subr.mxu0 0.0
    %133 = vmatpush2.msra.mxu0 0.0
    %134 = vmatprep.subr.mxu0 0.0
    %135 = vmatpush2.msra.mxu0 0.0
    %136 = vmatprep.subr.mxu0 0.0
    %137 = vmatpush2.msra.mxu0 0.0
    %138 = vmatprep.subr.mxu0 0.0
    %139 = vmatpush2.msra.mxu0 0.0
    %140 = vmatprep.subr.mxu0 0.0
    %141 = vmatpush2.msra.mxu0 0.0
    %142 = vmatprep.subr.mxu0 0.0
    %143 = vmatpush2.msra.mxu0 0.0
    %144 = vmatprep.subr.mxu0 0.0
    %145 = vmatpush2.msra.mxu0 0.0
    %146 = vmatprep.subr.mxu0 0.0
    %147 = vmatpush2.msra.mxu0 0.0
    %148 = vmatprep.subr.mxu0 0.0
    %149 = vmatpush2.msra.mxu0 0.0
    %150 = vmatprep.subr.mxu0 0.0
    %151 = vmatpush2.msra.mxu0 0.0
    %152 = vmatprep.subr.mxu0 0.0
    %153 = vmatpush2.msra.mxu0 0.0
    %154 = vmatprep.subr.mxu0 0.0
    %155 = vmatpush2.msra.mxu0 0.0
    %156 = vmatprep.subr.mxu0 0.0
    %157 = vmatpush2.msra.mxu0 0.0
    %158 = vmatprep.subr.mxu0 0.0
    %159 = vmatpush2.msra.mxu0 0.0
    %160 = vmatprep.subr.mxu0 0.0
    %161 = vmatpush2.msra.mxu0 0.0
    %162 = vmatprep.mubr.f32.mxu0 0.0
    %163 = vmatmul.mubr.f32.gmra.mxu0 %v71
    %v164 = vpop.f32.mrf.mxu0
    %v165 = vadd.f32 %v67, %v164
    %v166 = vpop.f32.mrf.mxu0
    %167 = vmatprep.mubr.f32.mxu0 0.0
    %168 = vmatmul.mubr.f32.gmra.mxu0 %v74
    %v169 = vpop.f32.mrf.mxu0
    %v170 = vadd.f32 %v67, %v169
    %v171 = vpop.f32.mrf.mxu0
    %172 = vmatprep.mubr.f32.mxu0 0.0
    %173 = vmatmul.mubr.f32.gmra.mxu0 %v77
    %v174 = vpop.f32.mrf.mxu0
    %v175 = vadd.f32 %v67, %v174
    %v176 = vpop.f32.mrf.mxu0
    %177 = vmatprep.mubr.f32.mxu0 0.0
    %178 = vmatmul.mubr.f32.gmra.mxu0 %v80
    %v179 = vpop.f32.mrf.mxu0
    %v180 = vadd.f32 %v67, %v179
    %v181 = vpop.f32.mrf.mxu0
    %182 = vmatprep.mubr.f32.mxu0 0.0
    %183 = vmatmul.mubr.f32.gmra.mxu0 %v83
    %v184 = vpop.f32.mrf.mxu0
    %v185 = vadd.f32 %v67, %v184
    %v186 = vpop.f32.mrf.mxu0
    %187 = vmatprep.mubr.f32.mxu0 0.0
    %188 = vmatmul.mubr.f32.gmra.mxu0 %v86
    %v189 = vpop.f32.mrf.mxu0
    %v190 = vadd.f32 %v67, %v189
    %v191 = vpop.f32.mrf.mxu0
    %192 = vmatprep.mubr.f32.mxu0 0.0
    %193 = vmatmul.mubr.f32.gmra.mxu0 %v89
    %v194 = vpop.f32.mrf.mxu0
    %v195 = vadd.f32 %v67, %v194
    %v196 = vpop.f32.mrf.mxu0
    %197 = vmatprep.mubr.f32.mxu0 0.0
    %198 = vmatmul.mubr.f32.gmra.mxu0 %v92
    %v199 = vpop.f32.mrf.mxu0
    %v200 = vadd.f32 %v67, %v199
    %v201 = vpop.f32.mrf.mxu0
    %202 = vdwg.mxu0
    %v203 = vld [vmem:[#allocation2] sm:$0xff]
    %v204 = vld [vmem:[#allocation2 + $0x8] sm:$0xff]
    %v205 = vld [vmem:[#allocation2 + $0x10] sm:$0xff]
    %v206 = vld [vmem:[#allocation2 + $0x18] sm:$0xff]
    %v207 = vld [vmem:[#allocation2 + $0x20] sm:$0xff]
    %v208 = vld [vmem:[#allocation2 + $0x28] sm:$0xff]
    %v209 = vld [vmem:[#allocation2 + $0x30] sm:$0xff]
    %v210 = vld [vmem:[#allocation2 + $0x38] sm:$0xff]
    %v211 = vld [vmem:[#allocation2 + $0x40] sm:$0xff]
    %v212 = vld [vmem:[#allocation2 + $0x48] sm:$0xff]
    %v213 = vld [vmem:[#allocation2 + $0x50] sm:$0xff]
    %v214 = vld [vmem:[#allocation2 + $0x58] sm:$0xff]
    %v215 = vld [vmem:[#allocation2 + $0x60] sm:$0xff]
    %v216 = vld [vmem:[#allocation2 + $0x68] sm:$0xff]
    %v217 = vld [vmem:[#allocation2 + $0x70] sm:$0xff]
    %v218 = vld [vmem:[#allocation2 + $0x78] sm:$0xff]
    %219 = vmatprep.subr.mxu0 0.0
    %220 = vmatpush1.msra.mxu0 %v218
    %221 = vmatprep.subr.mxu0 0.0
    %222 = vmatpush1.msra.mxu0 %v217
    %223 = vmatprep.subr.mxu0 0.0
    %224 = vmatpush1.msra.mxu0 %v216
    %225 = vmatprep.subr.mxu0 0.0
    %226 = vmatpush1.msra.mxu0 %v215
    %227 = vmatprep.subr.mxu0 0.0
    %228 = vmatpush1.msra.mxu0 %v214
    %229 = vmatprep.subr.mxu0 0.0
    %230 = vmatpush1.msra.mxu0 %v213
    %231 = vmatprep.subr.mxu0 0.0
    %232 = vmatpush1.msra.mxu0 %v212
    %233 = vmatprep.subr.mxu0 0.0
    %234 = vmatpush1.msra.mxu0 %v211
    %235 = vmatprep.subr.mxu0 0.0
    %236 = vmatpush1.msra.mxu0 %v210
    %237 = vmatprep.subr.mxu0 0.0
    %238 = vmatpush1.msra.mxu0 %v209
    %239 = vmatprep.subr.mxu0 0.0
    %240 = vmatpush1.msra.mxu0 %v208
    %241 = vmatprep.subr.mxu0 0.0
    %242 = vmatpush1.msra.mxu0 %v207
    %243 = vmatprep.subr.mxu0 0.0
    %244 = vmatpush1.msra.mxu0 %v206
    %245 = vmatprep.subr.mxu0 0.0
    %246 = vmatpush1.msra.mxu0 %v205
    %247 = vmatprep.subr.mxu0 0.0
    %248 = vmatpush1.msra.mxu0 %v204
    %249 = vmatprep.subr.mxu0 0.0
    %250 = vmatpush1.msra.mxu0 %v203
    %251 = vmatprep.subr.mxu0 0.0
    %252 = vmatpush2.msra.mxu0 0.0
    %253 = vmatprep.subr.mxu0 0.0
    %254 = vmatpush2.msra.mxu0 0.0
    %255 = vmatprep.subr.mxu0 0.0
    %256 = vmatpush2.msra.mxu0 0.0
    %257 = vmatprep.subr.mxu0 0.0
    %258 = vmatpush2.msra.mxu0 0.0
    %259 = vmatprep.subr.mxu0 0.0
    %260 = vmatpush2.msra.mxu0 0.0
    %261 = vmatprep.subr.mxu0 0.0
    %262 = vmatpush2.msra.mxu0 0.0
    %263 = vmatprep.subr.mxu0 0.0
    %264 = vmatpush2.msra.mxu0 0.0
    %265 = vmatprep.subr.mxu0 0.0
    %266 = vmatpush2.msra.mxu0 0.0
    %267 = vmatprep.subr.mxu0 0.0
    %268 = vmatpush2.msra.mxu0 0.0
    %269 = vmatprep.subr.mxu0 0.0
    %270 = vmatpush2.msra.mxu0 0.0
    %271 = vmatprep.subr.mxu0 0.0
    %272 = vmatpush2.msra.mxu0 0.0
    %273 = vmatprep.subr.mxu0 0.0
    %274 = vmatpush2.msra.mxu0 0.0
    %275 = vmatprep.subr.mxu0 0.0
    %276 = vmatpush2.msra.mxu0 0.0
    %277 = vmatprep.subr.mxu0 0.0
    %278 = vmatpush2.msra.mxu0 0.0
    %279 = vmatprep.subr.mxu0 0.0
    %280 = vmatpush2.msra.mxu0 0.0
    %281 = vmatprep.subr.mxu0 0.0
    %282 = vmatpush2.msra.mxu0 0.0
    %283 = vmatprep.mubr.f32.mxu0 0.0
    %284 = vmatmul.mubr.f32.gmra.mxu0 0.0
    %v285 = vpop.f32.mrf.mxu0
    %v286 = vadd.f32 0.0, %v285
    %v287 = vpop.f32.mrf.mxu0
    %288 = vdwg.mxu0
    %v289 = vadd.f32 %v165, %v286
    %v290 = vmax.f32 %v289, 0.0
    %291 = vmatprep.subr.mxu0 0.0
    %292 = vmatpush1.msra.mxu0 %v218
    %293 = vmatprep.subr.mxu0 0.0
    %294 = vmatpush1.msra.mxu0 %v217
    %295 = vmatprep.subr.mxu0 0.0
    %296 = vmatpush1.msra.mxu0 %v216
    %297 = vmatprep.subr.mxu0 0.0
    %298 = vmatpush1.msra.mxu0 %v215
    %299 = vmatprep.subr.mxu0 0.0
    %300 = vmatpush1.msra.mxu0 %v214
    %301 = vmatprep.subr.mxu0 0.0
    %302 = vmatpush1.msra.mxu0 %v213
    %303 = vmatprep.subr.mxu0 0.0
    %304 = vmatpush1.msra.mxu0 %v212
    %305 = vmatprep.subr.mxu0 0.0
    %306 = vmatpush1.msra.mxu0 %v211
    %307 = vmatprep.subr.mxu0 0.0
    %308 = vmatpush1.msra.mxu0 %v210
    %309 = vmatprep.subr.mxu0 0.0
    %310 = vmatpush1.msra.mxu0 %v209
    %311 = vmatprep.subr.mxu0 0.0
    %312 = vmatpush1.msra.mxu0 %v208
    %313 = vmatprep.subr.mxu0 0.0
    %314 = vmatpush1.msra.mxu0 %v207
    %315 = vmatprep.subr.mxu0 0.0
    %316 = vmatpush1.msra.mxu0 %v206
    %317 = vmatprep.subr.mxu0 0.0
    %318 = vmatpush1.msra.mxu0 %v205
    %319 = vmatprep.subr.mxu0 0.0
    %320 = vmatpush1.msra.mxu0 %v204
    %321 = vmatprep.subr.mxu0 0.0
    %322 = vmatpush1.msra.mxu0 %v203
    %323 = vmatprep.subr.mxu0 0.0
    %324 = vmatpush2.msra.mxu0 0.0
    %325 = vmatprep.subr.mxu0 0.0
    %326 = vmatpush2.msra.mxu0 0.0
    %327 = vmatprep.subr.mxu0 0.0
    %328 = vmatpush2.msra.mxu0 0.0
    %329 = vmatprep.subr.mxu0 0.0
    %330 = vmatpush2.msra.mxu0 0.0
    %331 = vmatprep.subr.mxu0 0.0
    %332 = vmatpush2.msra.mxu0 0.0
    %333 = vmatprep.subr.mxu0 0.0
    %334 = vmatpush2.msra.mxu0 0.0
    %335 = vmatprep.subr.mxu0 0.0
    %336 = vmatpush2.msra.mxu0 0.0
    %337 = vmatprep.subr.mxu0 0.0
    %338 = vmatpush2.msra.mxu0 0.0
    %339 = vmatprep.subr.mxu0 0.0
    %340 = vmatpush2.msra.mxu0 0.0
    %341 = vmatprep.subr.mxu0 0.0
    %342 = vmatpush2.msra.mxu0 0.0
    %343 = vmatprep.subr.mxu0 0.0
    %344 = vmatpush2.msra.mxu0 0.0
    %345 = vmatprep.subr.mxu0 0.0
    %346 = vmatpush2.msra.mxu0 0.0
    %347 = vmatprep.subr.mxu0 0.0
    %348 = vmatpush2.msra.mxu0 0.0
    %349 = vmatprep.subr.mxu0 0.0
    %350 = vmatpush2.msra.mxu0 0.0
    %351 = vmatprep.subr.mxu0 0.0
    %352 = vmatpush2.msra.mxu0 0.0
    %353 = vmatprep.subr.mxu0 0.0
    %354 = vmatpush2.msra.mxu0 0.0
    %355 = vmatprep.mubr.f32.mxu0 0.0
    %356 = vmatmul.mubr.f32.gmra.mxu0 %v290
    %v357 = vpop.f32.mrf.mxu0
    %v358 = vadd.f32 0.0, %v357
    %v359 = vpop.f32.mrf.mxu0
    %360 = vdwg.mxu0
    %v361 = vadd.f32 %v170, %v358
    %v362 = vmax.f32 %v361, 0.0
    %363 = vmatprep.subr.mxu0 0.0
    %364 = vmatpush1.msra.mxu0 %v218
    %365 = vmatprep.subr.mxu0 0.0
    %366 = vmatpush1.msra.mxu0 %v217
    %367 = vmatprep.subr.mxu0 0.0
    %368 = vmatpush1.msra.mxu0 %v216
    %369 = vmatprep.subr.mxu0 0.0
    %370 = vmatpush1.msra.mxu0 %v215
    %371 = vmatprep.subr.mxu0 0.0
    %372 = vmatpush1.msra.mxu0 %v214
    %373 = vmatprep.subr.mxu0 0.0
    %374 = vmatpush1.msra.mxu0 %v213
    %375 = vmatprep.subr.mxu0 0.0
    %376 = vmatpush1.msra.mxu0 %v212
    %377 = vmatprep.subr.mxu0 0.0
    %378 = vmatpush1.msra.mxu0 %v211
    %379 = vmatprep.subr.mxu0 0.0
    %380 = vmatpush1.msra.mxu0 %v210
    %381 = vmatprep.subr.mxu0 0.0
    %382 = vmatpush1.msra.mxu0 %v209
    %383 = vmatprep.subr.mxu0 0.0
    %384 = vmatpush1.msra.mxu0 %v208
    %385 = vmatprep.subr.mxu0 0.0
    %386 = vmatpush1.msra.mxu0 %v207
    %387 = vmatprep.subr.mxu0 0.0
    %388 = vmatpush1.msra.mxu0 %v206
    %389 = vmatprep.subr.mxu0 0.0
    %390 = vmatpush1.msra.mxu0 %v205
    %391 = vmatprep.subr.mxu0 0.0
    %392 = vmatpush1.msra.mxu0 %v204
    %393 = vmatprep.subr.mxu0 0.0
    %394 = vmatpush1.msra.mxu0 %v203
    %395 = vmatprep.subr.mxu0 0.0
    %396 = vmatpush2.msra.mxu0 0.0
    %397 = vmatprep.subr.mxu0 0.0
    %398 = vmatpush2.msra.mxu0 0.0
    %399 = vmatprep.subr.mxu0 0.0
    %400 = vmatpush2.msra.mxu0 0.0
    %401 = vmatprep.subr.mxu0 0.0
    %402 = vmatpush2.msra.mxu0 0.0
    %403 = vmatprep.subr.mxu0 0.0
    %404 = vmatpush2.msra.mxu0 0.0
    %405 = vmatprep.subr.mxu0 0.0
    %406 = vmatpush2.msra.mxu0 0.0
    %407 = vmatprep.subr.mxu0 0.0
    %408 = vmatpush2.msra.mxu0 0.0
    %409 = vmatprep.subr.mxu0 0.0
    %410 = vmatpush2.msra.mxu0 0.0
    %411 = vmatprep.subr.mxu0 0.0
    %412 = vmatpush2.msra.mxu0 0.0
    %413 = vmatprep.subr.mxu0 0.0
    %414 = vmatpush2.msra.mxu0 0.0
    %415 = vmatprep.subr.mxu0 0.0
    %416 = vmatpush2.msra.mxu0 0.0
    %417 = vmatprep.subr.mxu0 0.0
    %418 = vmatpush2.msra.mxu0 0.0
    %419 = vmatprep.subr.mxu0 0.0
    %420 = vmatpush2.msra.mxu0 0.0
    %421 = vmatprep.subr.mxu0 0.0
    %422 = vmatpush2.msra.mxu0 0.0
    %423 = vmatprep.subr.mxu0 0.0
    %424 = vmatpush2.msra.mxu0 0.0
    %425 = vmatprep.subr.mxu0 0.0
    %426 = vmatpush2.msra.mxu0 0.0
    %427 = vmatprep.mubr.f32.mxu0 0.0
    %428 = vmatmul.mubr.f32.gmra.mxu0 %v362
    %v429 = vpop.f32.mrf.mxu0
    %v430 = vadd.f32 0.0, %v429
    %v431 = vpop.f32.mrf.mxu0
    %432 = vdwg.mxu0
    %v433 = vadd.f32 %v175, %v430
    %v434 = vmax.f32 %v433, 0.0
    %435 = vmatprep.subr.mxu0 0.0
    %436 = vmatpush1.msra.mxu0 %v218
    %437 = vmatprep.subr.mxu0 0.0
    %438 = vmatpush1.msra.mxu0 %v217
    %439 = vmatprep.subr.mxu0 0.0
    %440 = vmatpush1.msra.mxu0 %v216
    %441 = vmatprep.subr.mxu0 0.0
    %442 = vmatpush1.msra.mxu0 %v215
    %443 = vmatprep.subr.mxu0 0.0
    %444 = vmatpush1.msra.mxu0 %v214
    %445 = vmatprep.subr.mxu0 0.0
    %446 = vmatpush1.msra.mxu0 %v213
    %447 = vmatprep.subr.mxu0 0.0
    %448 = vmatpush1.msra.mxu0 %v212
    %449 = vmatprep.subr.mxu0 0.0
    %450 = vmatpush1.msra.mxu0 %v211
    %451 = vmatprep.subr.mxu0 0.0
    %452 = vmatpush1.msra.mxu0 %v210
    %453 = vmatprep.subr.mxu0 0.0
    %454 = vmatpush1.msra.mxu0 %v209
    %455 = vmatprep.subr.mxu0 0.0
    %456 = vmatpush1.msra.mxu0 %v208
    %457 = vmatprep.subr.mxu0 0.0
    %458 = vmatpush1.msra.mxu0 %v207
    %459 = vmatprep.subr.mxu0 0.0
    %460 = vmatpush1.msra.mxu0 %v206
    %461 = vmatprep.subr.mxu0 0.0
    %462 = vmatpush1.msra.mxu0 %v205
    %463 = vmatprep.subr.mxu0 0.0
    %464 = vmatpush1.msra.mxu0 %v204
    %465 = vmatprep.subr.mxu0 0.0
    %466 = vmatpush1.msra.mxu0 %v203
    %467 = vmatprep.subr.mxu0 0.0
    %468 = vmatpush2.msra.mxu0 0.0
    %469 = vmatprep.subr.mxu0 0.0
    %470 = vmatpush2.msra.mxu0 0.0
    %471 = vmatprep.subr.mxu0 0.0
    %472 = vmatpush2.msra.mxu0 0.0
    %473 = vmatprep.subr.mxu0 0.0
    %474 = vmatpush2.msra.mxu0 0.0
    %475 = vmatprep.subr.mxu0 0.0
    %476 = vmatpush2.msra.mxu0 0.0
    %477 = vmatprep.subr.mxu0 0.0
    %478 = vmatpush2.msra.mxu0 0.0
    %479 = vmatprep.subr.mxu0 0.0
    %480 = vmatpush2.msra.mxu0 0.0
    %481 = vmatprep.subr.mxu0 0.0
    %482 = vmatpush2.msra.mxu0 0.0
    %483 = vmatprep.subr.mxu0 0.0
    %484 = vmatpush2.msra.mxu0 0.0
    %485 = vmatprep.subr.mxu0 0.0
    %486 = vmatpush2.msra.mxu0 0.0
    %487 = vmatprep.subr.mxu0 0.0
    %488 = vmatpush2.msra.mxu0 0.0
    %489 = vmatprep.subr.mxu0 0.0
    %490 = vmatpush2.msra.mxu0 0.0
    %491 = vmatprep.subr.mxu0 0.0
    %492 = vmatpush2.msra.mxu0 0.0
    %493 = vmatprep.subr.mxu0 0.0
    %494 = vmatpush2.msra.mxu0 0.0
    %495 = vmatprep.subr.mxu0 0.0
    %496 = vmatpush2.msra.mxu0 0.0
    %497 = vmatprep.subr.mxu0 0.0
    %498 = vmatpush2.msra.mxu0 0.0
    %499 = vmatprep.mubr.f32.mxu0 0.0
    %500 = vmatmul.mubr.f32.gmra.mxu0 %v434
    %v501 = vpop.f32.mrf.mxu0
    %v502 = vadd.f32 0.0, %v501
    %v503 = vpop.f32.mrf.mxu0
    %504 = vdwg.mxu0
    %v505 = vadd.f32 %v180, %v502
    %v506 = vmax.f32 %v505, 0.0
    %507 = vmatprep.subr.mxu0 0.0
    %508 = vmatpush1.msra.mxu0 %v218
    %509 = vmatprep.subr.mxu0 0.0
    %510 = vmatpush1.msra.mxu0 %v217
    %511 = vmatprep.subr.mxu0 0.0
    %512 = vmatpush1.msra.mxu0 %v216
    %513 = vmatprep.subr.mxu0 0.0
    %514 = vmatpush1.msra.mxu0 %v215
    %515 = vmatprep.subr.mxu0 0.0
    %516 = vmatpush1.msra.mxu0 %v214
    %517 = vmatprep.subr.mxu0 0.0
    %518 = vmatpush1.msra.mxu0 %v213
    %519 = vmatprep.subr.mxu0 0.0
    %520 = vmatpush1.msra.mxu0 %v212
    %521 = vmatprep.subr.mxu0 0.0
    %522 = vmatpush1.msra.mxu0 %v211
    %523 = vmatprep.subr.mxu0 0.0
    %524 = vmatpush1.msra.mxu0 %v210
    %525 = vmatprep.subr.mxu0 0.0
    %526 = vmatpush1.msra.mxu0 %v209
    %527 = vmatprep.subr.mxu0 0.0
    %528 = vmatpush1.msra.mxu0 %v208
    %529 = vmatprep.subr.mxu0 0.0
    %530 = vmatpush1.msra.mxu0 %v207
    %531 = vmatprep.subr.mxu0 0.0
    %532 = vmatpush1.msra.mxu0 %v206
    %533 = vmatprep.subr.mxu0 0.0
    %534 = vmatpush1.msra.mxu0 %v205
    %535 = vmatprep.subr.mxu0 0.0
    %536 = vmatpush1.msra.mxu0 %v204
    %537 = vmatprep.subr.mxu0 0.0
    %538 = vmatpush1.msra.mxu0 %v203
    %539 = vmatprep.subr.mxu0 0.0
    %540 = vmatpush2.msra.mxu0 0.0
    %541 = vmatprep.subr.mxu0 0.0
    %542 = vmatpush2.msra.mxu0 0.0
    %543 = vmatprep.subr.mxu0 0.0
    %544 = vmatpush2.msra.mxu0 0.0
    %545 = vmatprep.subr.mxu0 0.0
    %546 = vmatpush2.msra.mxu0 0.0
    %547 = vmatprep.subr.mxu0 0.0
    %548 = vmatpush2.msra.mxu0 0.0
    %549 = vmatprep.subr.mxu0 0.0
    %550 = vmatpush2.msra.mxu0 0.0
    %551 = vmatprep.subr.mxu0 0.0
    %552 = vmatpush2.msra.mxu0 0.0
    %553 = vmatprep.subr.mxu0 0.0
    %554 = vmatpush2.msra.mxu0 0.0
    %555 = vmatprep.subr.mxu0 0.0
    %556 = vmatpush2.msra.mxu0 0.0
    %557 = vmatprep.subr.mxu0 0.0
    %558 = vmatpush2.msra.mxu0 0.0
    %559 = vmatprep.subr.mxu0 0.0
    %560 = vmatpush2.msra.mxu0 0.0
    %561 = vmatprep.subr.mxu0 0.0
    %562 = vmatpush2.msra.mxu0 0.0
    %563 = vmatprep.subr.mxu0 0.0
    %564 = vmatpush2.msra.mxu0 0.0
    %565 = vmatprep.subr.mxu0 0.0
    %566 = vmatpush2.msra.mxu0 0.0
    %567 = vmatprep.subr.mxu0 0.0
    %568 = vmatpush2.msra.mxu0 0.0
    %569 = vmatprep.subr.mxu0 0.0
    %570 = vmatpush2.msra.mxu0 0.0
    %571 = vmatprep.mubr.f32.mxu0 0.0
    %572 = vmatmul.mubr.f32.gmra.mxu0 %v506
    %v573 = vpop.f32.mrf.mxu0
    %v574 = vadd.f32 0.0, %v573
    %v575 = vpop.f32.mrf.mxu0
    %576 = vdwg.mxu0
    %v577 = vadd.f32 %v185, %v574
    %v578 = vmax.f32 %v577, 0.0
    %579 = vmatprep.subr.mxu0 0.0
    %580 = vmatpush1.msra.mxu0 %v218
    %581 = vmatprep.subr.mxu0 0.0
    %582 = vmatpush1.msra.mxu0 %v217
    %583 = vmatprep.subr.mxu0 0.0
    %584 = vmatpush1.msra.mxu0 %v216
    %585 = vmatprep.subr.mxu0 0.0
    %586 = vmatpush1.msra.mxu0 %v215
    %587 = vmatprep.subr.mxu0 0.0
    %588 = vmatpush1.msra.mxu0 %v214
    %589 = vmatprep.subr.mxu0 0.0
    %590 = vmatpush1.msra.mxu0 %v213
    %591 = vmatprep.subr.mxu0 0.0
    %592 = vmatpush1.msra.mxu0 %v212
    %593 = vmatprep.subr.mxu0 0.0
    %594 = vmatpush1.msra.mxu0 %v211
    %595 = vmatprep.subr.mxu0 0.0
    %596 = vmatpush1.msra.mxu0 %v210
    %597 = vmatprep.subr.mxu0 0.0
    %598 = vmatpush1.msra.mxu0 %v209
    %599 = vmatprep.subr.mxu0 0.0
    %600 = vmatpush1.msra.mxu0 %v208
    %601 = vmatprep.subr.mxu0 0.0
    %602 = vmatpush1.msra.mxu0 %v207
    %603 = vmatprep.subr.mxu0 0.0
    %604 = vmatpush1.msra.mxu0 %v206
    %605 = vmatprep.subr.mxu0 0.0
    %606 = vmatpush1.msra.mxu0 %v205
    %607 = vmatprep.subr.mxu0 0.0
    %608 = vmatpush1.msra.mxu0 %v204
    %609 = vmatprep.subr.mxu0 0.0
    %610 = vmatpush1.msra.mxu0 %v203
    %611 = vmatprep.subr.mxu0 0.0
    %612 = vmatpush2.msra.mxu0 0.0
    %613 = vmatprep.subr.mxu0 0.0
    %614 = vmatpush2.msra.mxu0 0.0
    %615 = vmatprep.subr.mxu0 0.0
    %616 = vmatpush2.msra.mxu0 0.0
    %617 = vmatprep.subr.mxu0 0.0
    %618 = vmatpush2.msra.mxu0 0.0
    %619 = vmatprep.subr.mxu0 0.0
    %620 = vmatpush2.msra.mxu0 0.0
    %621 = vmatprep.subr.mxu0 0.0
    %622 = vmatpush2.msra.mxu0 0.0
    %623 = vmatprep.subr.mxu0 0.0
    %624 = vmatpush2.msra.mxu0 0.0
    %625 = vmatprep.subr.mxu0 0.0
    %626 = vmatpush2.msra.mxu0 0.0
    %627 = vmatprep.subr.mxu0 0.0
    %628 = vmatpush2.msra.mxu0 0.0
    %629 = vmatprep.subr.mxu0 0.0
    %630 = vmatpush2.msra.mxu0 0.0
    %631 = vmatprep.subr.mxu0 0.0
    %632 = vmatpush2.msra.mxu0 0.0
    %633 = vmatprep.subr.mxu0 0.0
    %634 = vmatpush2.msra.mxu0 0.0
    %635 = vmatprep.subr.mxu0 0.0
    %636 = vmatpush2.msra.mxu0 0.0
    %637 = vmatprep.subr.mxu0 0.0
    %638 = vmatpush2.msra.mxu0 0.0
    %639 = vmatprep.subr.mxu0 0.0
    %640 = vmatpush2.msra.mxu0 0.0
    %641 = vmatprep.subr.mxu0 0.0
    %642 = vmatpush2.msra.mxu0 0.0
    %643 = vmatprep.mubr.f32.mxu0 0.0
    %644 = vmatmul.mubr.f32.gmra.mxu0 %v578
    %v645 = vpop.f32.mrf.mxu0
    %v646 = vadd.f32 0.0, %v645
    %v647 = vpop.f32.mrf.mxu0
    %648 = vdwg.mxu0
    %v649 = vadd.f32 %v190, %v646
    %v650 = vmax.f32 %v649, 0.0
    %651 = vmatprep.subr.mxu0 0.0
    %652 = vmatpush1.msra.mxu0 %v218
    %653 = vmatprep.subr.mxu0 0.0
    %654 = vmatpush1.msra.mxu0 %v217
    %655 = vmatprep.subr.mxu0 0.0
    %656 = vmatpush1.msra.mxu0 %v216
    %657 = vmatprep.subr.mxu0 0.0
    %658 = vmatpush1.msra.mxu0 %v215
    %659 = vmatprep.subr.mxu0 0.0
    %660 = vmatpush1.msra.mxu0 %v214
    %661 = vmatprep.subr.mxu0 0.0
    %662 = vmatpush1.msra.mxu0 %v213
    %663 = vmatprep.subr.mxu0 0.0
    %664 = vmatpush1.msra.mxu0 %v212
    %665 = vmatprep.subr.mxu0 0.0
    %666 = vmatpush1.msra.mxu0 %v211
    %667 = vmatprep.subr.mxu0 0.0
    %668 = vmatpush1.msra.mxu0 %v210
    %669 = vmatprep.subr.mxu0 0.0
    %670 = vmatpush1.msra.mxu0 %v209
    %671 = vmatprep.subr.mxu0 0.0
    %672 = vmatpush1.msra.mxu0 %v208
    %673 = vmatprep.subr.mxu0 0.0
    %674 = vmatpush1.msra.mxu0 %v207
    %675 = vmatprep.subr.mxu0 0.0
    %676 = vmatpush1.msra.mxu0 %v206
    %677 = vmatprep.subr.mxu0 0.0
    %678 = vmatpush1.msra.mxu0 %v205
    %679 = vmatprep.subr.mxu0 0.0
    %680 = vmatpush1.msra.mxu0 %v204
    %681 = vmatprep.subr.mxu0 0.0
    %682 = vmatpush1.msra.mxu0 %v203
    %683 = vmatprep.subr.mxu0 0.0
    %684 = vmatpush2.msra.mxu0 0.0
    %685 = vmatprep.subr.mxu0 0.0
    %686 = vmatpush2.msra.mxu0 0.0
    %687 = vmatprep.subr.mxu0 0.0
    %688 = vmatpush2.msra.mxu0 0.0
    %689 = vmatprep.subr.mxu0 0.0
    %690 = vmatpush2.msra.mxu0 0.0
    %691 = vmatprep.subr.mxu0 0.0
    %692 = vmatpush2.msra.mxu0 0.0
    %693 = vmatprep.subr.mxu0 0.0
    %694 = vmatpush2.msra.mxu0 0.0
    %695 = vmatprep.subr.mxu0 0.0
    %696 = vmatpush2.msra.mxu0 0.0
    %697 = vmatprep.subr.mxu0 0.0
    %698 = vmatpush2.msra.mxu0 0.0
    %699 = vmatprep.subr.mxu0 0.0
    %700 = vmatpush2.msra.mxu0 0.0
    %701 = vmatprep.subr.mxu0 0.0
    %702 = vmatpush2.msra.mxu0 0.0
    %703 = vmatprep.subr.mxu0 0.0
    %704 = vmatpush2.msra.mxu0 0.0
    %705 = vmatprep.subr.mxu0 0.0
    %706 = vmatpush2.msra.mxu0 0.0
    %707 = vmatprep.subr.mxu0 0.0
    %708 = vmatpush2.msra.mxu0 0.0
    %709 = vmatprep.subr.mxu0 0.0
    %710 = vmatpush2.msra.mxu0 0.0
    %711 = vmatprep.subr.mxu0 0.0
    %712 = vmatpush2.msra.mxu0 0.0
    %713 = vmatprep.subr.mxu0 0.0
    %714 = vmatpush2.msra.mxu0 0.0
    %715 = vmatprep.mubr.f32.mxu0 0.0
    %716 = vmatmul.mubr.f32.gmra.mxu0 %v650
    %v717 = vpop.f32.mrf.mxu0
    %v718 = vadd.f32 0.0, %v717
    %v719 = vpop.f32.mrf.mxu0
    %720 = vdwg.mxu0
    %v721 = vadd.f32 %v195, %v718
    %v722 = vmax.f32 %v721, 0.0
    %723 = vmatprep.subr.mxu0 0.0
    %724 = vmatpush1.msra.mxu0 %v218
    %725 = vmatprep.subr.mxu0 0.0
    %726 = vmatpush1.msra.mxu0 %v217
    %727 = vmatprep.subr.mxu0 0.0
    %728 = vmatpush1.msra.mxu0 %v216
    %729 = vmatprep.subr.mxu0 0.0
    %730 = vmatpush1.msra.mxu0 %v215
    %731 = vmatprep.subr.mxu0 0.0
    %732 = vmatpush1.msra.mxu0 %v214
    %733 = vmatprep.subr.mxu0 0.0
    %734 = vmatpush1.msra.mxu0 %v213
    %735 = vmatprep.subr.mxu0 0.0
    %736 = vmatpush1.msra.mxu0 %v212
    %737 = vmatprep.subr.mxu0 0.0
    %738 = vmatpush1.msra.mxu0 %v211
    %739 = vmatprep.subr.mxu0 0.0
    %740 = vmatpush1.msra.mxu0 %v210
    %741 = vmatprep.subr.mxu0 0.0
    %742 = vmatpush1.msra.mxu0 %v209
    %743 = vmatprep.subr.mxu0 0.0
    %744 = vmatpush1.msra.mxu0 %v208
    %745 = vmatprep.subr.mxu0 0.0
    %746 = vmatpush1.msra.mxu0 %v207
    %747 = vmatprep.subr.mxu0 0.0
    %748 = vmatpush1.msra.mxu0 %v206
    %749 = vmatprep.subr.mxu0 0.0
    %750 = vmatpush1.msra.mxu0 %v205
    %751 = vmatprep.subr.mxu0 0.0
    %752 = vmatpush1.msra.mxu0 %v204
    %753 = vmatprep.subr.mxu0 0.0
    %754 = vmatpush1.msra.mxu0 %v203
    %755 = vmatprep.subr.mxu0 0.0
    %756 = vmatpush2.msra.mxu0 0.0
    %757 = vmatprep.subr.mxu0 0.0
    %758 = vmatpush2.msra.mxu0 0.0
    %759 = vmatprep.subr.mxu0 0.0
    %760 = vmatpush2.msra.mxu0 0.0
    %761 = vmatprep.subr.mxu0 0.0
    %762 = vmatpush2.msra.mxu0 0.0
    %763 = vmatprep.subr.mxu0 0.0
    %764 = vmatpush2.msra.mxu0 0.0
    %765 = vmatprep.subr.mxu0 0.0
    %766 = vmatpush2.msra.mxu0 0.0
    %767 = vmatprep.subr.mxu0 0.0
    %768 = vmatpush2.msra.mxu0 0.0
    %769 = vmatprep.subr.mxu0 0.0
    %770 = vmatpush2.msra.mxu0 0.0
    %771 = vmatprep.subr.mxu0 0.0
    %772 = vmatpush2.msra.mxu0 0.0
    %773 = vmatprep.subr.mxu0 0.0
    %774 = vmatpush2.msra.mxu0 0.0
    %775 = vmatprep.subr.mxu0 0.0
    %776 = vmatpush2.msra.mxu0 0.0
    %777 = vmatprep.subr.mxu0 0.0
    %778 = vmatpush2.msra.mxu0 0.0
    %779 = vmatprep.subr.mxu0 0.0
    %780 = vmatpush2.msra.mxu0 0.0
    %781 = vmatprep.subr.mxu0 0.0
    %782 = vmatpush2.msra.mxu0 0.0
    %783 = vmatprep.subr.mxu0 0.0
    %784 = vmatpush2.msra.mxu0 0.0
    %785 = vmatprep.subr.mxu0 0.0
    %786 = vmatpush2.msra.mxu0 0.0
    %787 = vmatprep.mubr.f32.mxu0 0.0
    %788 = vmatmul.mubr.f32.gmra.mxu0 %v722
    %v789 = vpop.f32.mrf.mxu0
    %v790 = vadd.f32 0.0, %v789
    %v791 = vpop.f32.mrf.mxu0
    %792 = vdwg.mxu0
    %v793 = vadd.f32 %v200, %v790
    %v794 = vmax.f32 %v793, 0.0
    %795 = vst [vmem:[%s7] sm:$0xff] %v290
    %796 = vst [vmem:[%s7 + $0x8] sm:$0xff] %v362
    %797 = vst [vmem:[%s7 + $0x10] sm:$0xff] %v434
    %798 = vst [vmem:[%s7 + $0x18] sm:$0xff] %v506
    %799 = vst [vmem:[%s7 + $0x20] sm:$0xff] %v578
    %800 = vst [vmem:[%s7 + $0x28] sm:$0xff] %v650
    %801 = vst [vmem:[%s7 + $0x30] sm:$0xff] %v722
    %802 = vst [vmem:[%s7 + $0x38] sm:$0xff] %v794
    %v803 = vld [vmem:[#allocation4] sm:$0xff]
    %v804 = vld [vmem:[#allocation4 + $0x8] sm:$0xff]
    %v805 = vld [vmem:[#allocation4 + $0x10] sm:$0xff]
    %v806 = vld [vmem:[#allocation4 + $0x18] sm:$0xff]
    %v807 = vld [vmem:[#allocation4 + $0x20] sm:$0xff]
    %v808 = vld [vmem:[#allocation4 + $0x28] sm:$0xff]
    %v809 = vld [vmem:[#allocation4 + $0x30] sm:$0xff]
    %v810 = vld [vmem:[#allocation4 + $0x38] sm:$0xff]
    %v811 = vld [vmem:[#allocation4 + $0x40] sm:$0xff]
    %v812 = vld [vmem:[#allocation4 + $0x48] sm:$0xff]
    %v813 = vld [vmem:[#allocation4 + $0x50] sm:$0xff]
    %v814 = vld [vmem:[#allocation4 + $0x58] sm:$0xff]
    %v815 = vld [vmem:[#allocation4 + $0x60] sm:$0xff]
    %v816 = vld [vmem:[#allocation4 + $0x68] sm:$0xff]
    %v817 = vld [vmem:[#allocation4 + $0x70] sm:$0xff]
    %v818 = vld [vmem:[#allocation4 + $0x78] sm:$0xff]
    %v819 = vld [vmem:[%s5] sm:$0x1]
    %v821 = vlaneseq
    %v822 = vshrl.u32 %v821, 7
    %v823 = vsub.s32 0, %v822
    %v824 = vrot.slane %v819, %v823
    %826 = vmatprep.subr.mxu0 0.0
    %827 = vmatpush1.msra.mxu0 %v818
    %828 = vmatprep.subr.mxu0 0.0
    %829 = vmatpush1.msra.mxu0 %v817
    %830 = vmatprep.subr.mxu0 0.0
    %831 = vmatpush1.msra.mxu0 %v816
    %832 = vmatprep.subr.mxu0 0.0
    %833 = vmatpush1.msra.mxu0 %v815
    %834 = vmatprep.subr.mxu0 0.0
    %835 = vmatpush1.msra.mxu0 %v814
    %836 = vmatprep.subr.mxu0 0.0
    %837 = vmatpush1.msra.mxu0 %v813
    %838 = vmatprep.subr.mxu0 0.0
    %839 = vmatpush1.msra.mxu0 %v812
    %840 = vmatprep.subr.mxu0 0.0
    %841 = vmatpush1.msra.mxu0 %v811
    %842 = vmatprep.subr.mxu0 0.0
    %843 = vmatpush1.msra.mxu0 %v810
    %844 = vmatprep.subr.mxu0 0.0
    %845 = vmatpush1.msra.mxu0 %v809
    %846 = vmatprep.subr.mxu0 0.0
    %847 = vmatpush1.msra.mxu0 %v808
    %848 = vmatprep.subr.mxu0 0.0
    %849 = vmatpush1.msra.mxu0 %v807
    %850 = vmatprep.subr.mxu0 0.0
    %851 = vmatpush1.msra.mxu0 %v806
    %852 = vmatprep.subr.mxu0 0.0
    %853 = vmatpush1.msra.mxu0 %v805
    %854 = vmatprep.subr.mxu0 0.0
    %855 = vmatpush1.msra.mxu0 %v804
    %856 = vmatprep.subr.mxu0 0.0
    %857 = vmatpush1.msra.mxu0 %v803
    %858 = vmatprep.subr.mxu0 0.0
    %859 = vmatpush2.msra.mxu0 0.0
    %860 = vmatprep.subr.mxu0 0.0
    %861 = vmatpush2.msra.mxu0 0.0
    %862 = vmatprep.subr.mxu0 0.0
    %863 = vmatpush2.msra.mxu0 0.0
    %864 = vmatprep.subr.mxu0 0.0
    %865 = vmatpush2.msra.mxu0 0.0
    %866 = vmatprep.subr.mxu0 0.0
    %867 = vmatpush2.msra.mxu0 0.0
    %868 = vmatprep.subr.mxu0 0.0
    %869 = vmatpush2.msra.mxu0 0.0
    %870 = vmatprep.subr.mxu0 0.0
    %871 = vmatpush2.msra.mxu0 0.0
    %872 = vmatprep.subr.mxu0 0.0
    %873 = vmatpush2.msra.mxu0 0.0
    %874 = vmatprep.subr.mxu0 0.0
    %875 = vmatpush2.msra.mxu0 0.0
    %876 = vmatprep.subr.mxu0 0.0
    %877 = vmatpush2.msra.mxu0 0.0
    %878 = vmatprep.subr.mxu0 0.0
    %879 = vmatpush2.msra.mxu0 0.0
    %880 = vmatprep.subr.mxu0 0.0
    %881 = vmatpush2.msra.mxu0 0.0
    %882 = vmatprep.subr.mxu0 0.0
    %883 = vmatpush2.msra.mxu0 0.0
    %884 = vmatprep.subr.mxu0 0.0
    %885 = vmatpush2.msra.mxu0 0.0
    %886 = vmatprep.subr.mxu0 0.0
    %887 = vmatpush2.msra.mxu0 0.0
    %888 = vmatprep.subr.mxu0 0.0
    %889 = vmatpush2.msra.mxu0 0.0
    %890 = vmatprep.mubr.f32.mxu0 0.0
    %891 = vmatmul.mubr.f32.gmra.mxu0 %v290
    %v892 = vpop.f32.mrf.mxu0
    %v893 = vadd.f32 %v824, %v892
    %v894 = vpop.f32.mrf.mxu0
    %895 = vmatprep.mubr.f32.mxu0 0.0
    %896 = vmatmul.mubr.f32.gmra.mxu0 %v362
    %v897 = vpop.f32.mrf.mxu0
    %v898 = vadd.f32 %v824, %v897
    %v899 = vpop.f32.mrf.mxu0
    %900 = vmatprep.mubr.f32.mxu0 0.0
    %901 = vmatmul.mubr.f32.gmra.mxu0 %v434
    %v902 = vpop.f32.mrf.mxu0
    %v903 = vadd.f32 %v824, %v902
    %v904 = vpop.f32.mrf.mxu0
    %905 = vmatprep.mubr.f32.mxu0 0.0
    %906 = vmatmul.mubr.f32.gmra.mxu0 %v506
    %v907 = vpop.f32.mrf.mxu0
    %v908 = vadd.f32 %v824, %v907
    %v909 = vpop.f32.mrf.mxu0
    %910 = vmatprep.mubr.f32.mxu0 0.0
    %911 = vmatmul.mubr.f32.gmra.mxu0 %v578
    %v912 = vpop.f32.mrf.mxu0
    %v913 = vadd.f32 %v824, %v912
    %v914 = vpop.f32.mrf.mxu0
    %915 = vmatprep.mubr.f32.mxu0 0.0
    %916 = vmatmul.mubr.f32.gmra.mxu0 %v650
    %v917 = vpop.f32.mrf.mxu0
    %v918 = vadd.f32 %v824, %v917
    %v919 = vpop.f32.mrf.mxu0
    %920 = vmatprep.mubr.f32.mxu0 0.0
    %921 = vmatmul.mubr.f32.gmra.mxu0 %v722
    %v922 = vpop.f32.mrf.mxu0
    %v923 = vadd.f32 %v824, %v922
    %v924 = vpop.f32.mrf.mxu0
    %925 = vmatprep.mubr.f32.mxu0 0.0
    %926 = vmatmul.mubr.f32.gmra.mxu0 %v794
    %v927 = vpop.f32.mrf.mxu0
    %v928 = vadd.f32 %v824, %v927
    %v929 = vpop.f32.mrf.mxu0
    %930 = vdwg.mxu0
    %931 = vst [vmem:[%s6] sm:$0xff] %v893
    %932 = vst [vmem:[%s6 + $0x8] sm:$0xff] %v898
    %933 = vst [vmem:[%s6 + $0x10] sm:$0xff] %v903
    %934 = vst [vmem:[%s6 + $0x18] sm:$0xff] %v908
    %935 = vst [vmem:[%s6 + $0x20] sm:$0xff] %v913
    %936 = vst [vmem:[%s6 + $0x28] sm:$0xff] %v918
    %937 = vst [vmem:[%s6 + $0x30] sm:$0xff] %v923
    %938 = vst [vmem:[%s6 + $0x38] sm:$0xff] %v928
    // Predicated region
    $region34: #{net_forward.1} parent=1 // pred_check
      _
    $region35: #{net_forward.1} parent=1 // pred_check_branch
      %940 = sbr.rel (0) target = $region37
    $region36: #{net_forward.1} parent=1 // pred_region
      _
    $region37: #{net_forward.1} parent=1 // pred_fallthru
      _
    // Predicated region
    $region38: #{net_forward.1} parent=1 // pred_check
      _
    $region39: #{net_forward.1} parent=1 // pred_check_branch
      %942 = sbr.rel (0) target = $region41
    $region40: #{net_forward.1} parent=1 // pred_region
      _
    $region41: #{net_forward.1} parent=1 // pred_fallthru
      _
    // Predicated region
    $region42: #{net_forward.1} parent=1 // pred_check
      _
    $region43: #{net_forward.1} parent=1 // pred_check_branch
      %944 = sbr.rel (0) target = $region45
    $region44: #{net_forward.1} parent=1 // pred_region
      _
    $region45: #{net_forward.1} parent=1 // pred_fallthru
      _
    // Predicated region
    $region46: #{net_forward.1} parent=1 // pred_check
      _
    $region47: #{net_forward.1} parent=1 // pred_check_branch
      %946 = sbr.rel (0) target = $region49
    $region48: #{net_forward.1} parent=1 // pred_region
      _
    $region49: #{net_forward.1} parent=1 // pred_fallthru
      _
    %947 = vsyncpa [#allocation3], 1
    %948 = vsyncpa [#allocation5], 1

</llo_original>
